<compile_context>
chip_gen: v5e
topology: v5e:2x2
jax: 0.10.0
libtpu: 0.0.40
codegen_flags: <defaults>
</compile_context>

<pallas_src>
import functools
import math

import jax
import jax.numpy as jnp
from jax import lax
from jax.experimental import pallas as pl
from jax.experimental.pallas import tpu as pltpu


# ----------------------------- kernel -------------------------------------- #

def mha_kernel(x_ref, wqkv_ref, bqkv_ref, wo_ref, bo_ref, o_ref,
               *, num_heads, mxu_dtype):
    """Fused per-batch MHA: QKV proj + softmax(QK^T)V + output projection."""
    S = x_ref.shape[1]
    E = x_ref.shape[2]
    Dh = wqkv_ref.shape[0]

    x_e = x_ref[0]                                   # (S, E)  f32
    wqkv = wqkv_ref[...].astype(mxu_dtype)           # (Dh, 3Dh)  (scale folded in)
    bqkv = bqkv_ref[...]                             # (1, 3Dh)   f32
    wo = wo_ref[...].astype(mxu_dtype)               # (E, E)

    acc = jnp.zeros((S, E), jnp.float32)             # fused output accumulator

    # Static (unrolled) head loop; per-head work is pure MXU + f32 VPU/EUP.
    for h in range(num_heads):
        xh = x_e[:, h * Dh:(h + 1) * Dh].astype(mxu_dtype)            # (S, Dh)

        # Fused Q/K/V projection: one (S,Dh)x(Dh,3Dh) matmul.
        qkv = jnp.dot(xh, wqkv, preferred_element_type=jnp.float32) + bqkv
        q = qkv[:, :Dh]                              # 1/sqrt(Dh) already in weights
        k = qkv[:, Dh:2 * Dh]
        v = qkv[:, 2 * Dh:]

        # scores = q @ k^T   (contract on Dh, no explicit transpose)
        s = lax.dot_general(q.astype(mxu_dtype), k.astype(mxu_dtype),
                            (((1,), (1,)), ((), ())),
                            preferred_element_type=jnp.float32)        # (S, S) f32

        # numerically-stable softmax over keys; normalize AFTER the PV matmul.
        m = jnp.max(s, axis=-1, keepdims=True)
        p = jnp.exp(s - m)                                             # (S, S) f32
        denom = jnp.sum(p, axis=-1, keepdims=True)                     # (S, 1)

        pv = jnp.dot(p.astype(mxu_dtype), v.astype(mxu_dtype),
                     preferred_element_type=jnp.float32)               # (S, Dh)
        head_out = pv * pl.reciprocal(denom, approx=True)              # (S, Dh)

        # Fused output projection: accumulate head_out @ Wo_t[h*Dh:(h+1)*Dh, :].
        acc = acc + jnp.dot(head_out.astype(mxu_dtype),
                            wo[h * Dh:(h + 1) * Dh, :],
                            preferred_element_type=jnp.float32)        # (S, E)

    o_ref[0] = acc + bo_ref[...]                                       # + output bias


# ----------------------------- wrapper -------------------------------------- #

def multi_head_attention(x, params, num_heads, mxu_dtype=jnp.bfloat16):
    N, S, E = x.shape
    Dh = E // num_heads
    assert Dh * num_heads == E

    # One-time parameter prep (outside the kernel, negligible):
    #  - concatenate Q/K/V weights/biases -> single (Dh, 3Dh) matmul in-kernel
    #  - fold 1/sqrt(Dh) into the Q projection (weights AND bias)
    scale = 1.0 / math.sqrt(Dh)
    wqkv_t = jnp.concatenate(
        [params["wq_t"] * scale, params["wk_t"], params["wv_t"]], axis=1)  # (Dh, 3Dh)
    bqkv = jnp.concatenate(
        [params["bq"] * scale, params["bk"], params["bv"]], axis=1)        # (1, 3Dh)

    kernel = functools.partial(mha_kernel, num_heads=num_heads,
                               mxu_dtype=mxu_dtype)

    out = pl.pallas_call(
        kernel,
        out_shape=jax.ShapeDtypeStruct((N, S, E), jnp.float32),
        grid=(N,),
        in_specs=[
            pl.BlockSpec((1, S, E), lambda n: (n, 0, 0)),        # x (lane-dense)
            pl.BlockSpec((Dh, 3 * Dh), lambda n: (0, 0)),        # fused QKV weight
            pl.BlockSpec((1, 3 * Dh), lambda n: (0, 0)),         # fused QKV bias
            pl.BlockSpec((E, E), lambda n: (0, 0)),              # output proj weight
            pl.BlockSpec((1, E), lambda n: (0, 0)),              # output proj bias
        ],
        out_specs=pl.BlockSpec((1, S, E), lambda n: (n, 0, 0)),  # lane-dense output
        compiler_params=pltpu.CompilerParams(
            dimension_semantics=("parallel",)                    # even split over 2 TCs on v7x
        ),
    )(x, wqkv_t, bqkv, params["wo_t"], params["bo"])

    return out


# ------------------------- pure-JAX reference ------------------------------- #

def reference(x, params, num_heads):
    N, S, E = x.shape
    Dh = E // num_heads
    x4 = x.reshape(N, S, num_heads, Dh)                          # (N, S, H, Dh)
    q = x4 @ params["wq_t"] + params["bq"][0]
    k = x4 @ params["wk_t"] + params["bk"][0]
    v = x4 @ params["wv_t"] + params["bv"][0]
    s = jnp.einsum("nqhd,nkhd->nhqk", q, k) / math.sqrt(Dh)
    p = jax.nn.softmax(s, axis=-1)
    o = jnp.einsum("nhqk,nkhd->nqhd", p, v).reshape(N, S, E)
    return o @ params["wo_t"] + params["bo"][0]


# ------------------------------- main ---------------------------------------- #

if __name__ == "__main__":
    N, S, E, H = 2, 8, 32, 4
    Dh = E // H

    key = jax.random.PRNGKey(0)
    keys = jax.random.split(key, 9)

    # Deterministic synthetic parameters (nn.Linear weights stored pre-transposed
    # so kernels compute x @ W_t + b, matching y = x @ W.T + b).
    params = {
        "wq_t": 0.1 * jax.random.normal(keys[0], (Dh, Dh), jnp.float32),
        "wk_t": 0.1 * jax.random.normal(keys[1], (Dh, Dh), jnp.float32),
        "wv_t": 0.1 * jax.random.normal(keys[2], (Dh, Dh), jnp.float32),
        "bq":   0.1 * jax.random.normal(keys[3], (1, Dh), jnp.float32),
        "bk":   0.1 * jax.random.normal(keys[4], (1, Dh), jnp.float32),
        "bv":   0.1 * jax.random.normal(keys[5], (1, Dh), jnp.float32),
        "wo_t": 0.1 * jax.random.normal(keys[6], (E, E), jnp.float32),
        "bo":   0.1 * jax.random.normal(keys[7], (1, E), jnp.float32),
    }

    x = jax.random.normal(keys[8], (N, S, E), jnp.float32)

    out = multi_head_attention(x, params, H)
    out = jax.block_until_ready(out)

    ref = reference(x, params, H)
    assert out.shape == (N, S, E)
    # Tolerance loosened because MXU operands are cast to bf16 (f32 accumulation).
    assert jnp.allclose(out, ref, atol=2e-2, rtol=2e-2), "mismatch vs reference"

    print("KERNEL_OK")
</pallas_src>

<mosaic_0001>
module attributes {stable_mosaic.version = 11 : i64} {
  func.func @mha_kernel(%arg0: i32, %arg1: memref<1x8x32xf32, #tpu.memory_space<vmem>>, %arg2: memref<8x24xf32, #tpu.memory_space<vmem>>, %arg3: memref<1x24xf32, #tpu.memory_space<vmem>>, %arg4: memref<32x32xf32, #tpu.memory_space<vmem>>, %arg5: memref<1x32xf32, #tpu.memory_space<vmem>>, %arg6: memref<1x8x32xf32, #tpu.memory_space<vmem>>) attributes {dimension_semantics = [#tpu.dimension_semantics<parallel>], iteration_bounds = array<i64: 2>, scalar_prefetch = 0 : i64, scratch_operands = 0 : i64, tpu.core_type = #tpu.core_type<tc>, window_params = [{transform_indices = @transform_0, window_bounds = array<i64: 1, 8, 32>}, {pipeline_mode = #tpu.pipeline_mode<synchronous>, transform_indices = @transform_1, window_bounds = array<i64: 8, 24>}, {pipeline_mode = #tpu.pipeline_mode<synchronous>, transform_indices = @transform_2, window_bounds = array<i64: 1, 24>}, {pipeline_mode = #tpu.pipeline_mode<synchronous>, transform_indices = @transform_3, window_bounds = array<i64: 32, 32>}, {pipeline_mode = #tpu.pipeline_mode<synchronous>, transform_indices = @transform_4, window_bounds = array<i64: 1, 32>}, {transform_indices = @transform_5, window_bounds = array<i64: 1, 8, 32>}]} {
    %c0 = arith.constant 0 : index
    %c0_0 = arith.constant 0 : index
    %c0_1 = arith.constant 0 : index
    %0 = vector.load %arg1[%c0, %c0_0, %c0_1] : memref<1x8x32xf32, #tpu.memory_space<vmem>>, vector<1x8x32xf32>
    %1 = vector.shape_cast %0 : vector<1x8x32xf32> to vector<8x32xf32>
    %c0_2 = arith.constant 0 : index
    %c0_3 = arith.constant 0 : index
    %2 = vector.load %arg2[%c0_2, %c0_3] : memref<8x24xf32, #tpu.memory_space<vmem>>, vector<8x24xf32>
    %3 = arith.truncf %2 : vector<8x24xf32> to vector<8x24xbf16>
    %c0_4 = arith.constant 0 : index
    %c0_5 = arith.constant 0 : index
    %4 = vector.load %arg3[%c0_4, %c0_5] : memref<1x24xf32, #tpu.memory_space<vmem>>, vector<1x24xf32>
    %c0_6 = arith.constant 0 : index
    %c0_7 = arith.constant 0 : index
    %5 = vector.load %arg4[%c0_6, %c0_7] : memref<32x32xf32, #tpu.memory_space<vmem>>, vector<32x32xf32>
    %6 = arith.truncf %5 : vector<32x32xf32> to vector<32x32xbf16>
    %cst = arith.constant 0.000000e+00 : f32
    %7 = vector.broadcast %cst : f32 to vector<8x32xf32>
    %8 = vector.extract_strided_slice %1 {offsets = [0, 0], sizes = [8, 8], strides = [1, 1]} : vector<8x32xf32> to vector<8x8xf32>
    %9 = arith.truncf %8 : vector<8x8xf32> to vector<8x8xbf16>
    %cst_8 = arith.constant dense<0.000000e+00> : vector<8x24xf32>
    %10 = tpu.matmul %9, %3, %cst_8 {dimension_numbers = #tpu.dot_dimension_numbers<[1], [0], [0], [1], [0, 0, 1, 1], [], []>} : vector<8x8xbf16>, vector<8x24xbf16>, vector<8x24xf32> -> vector<8x24xf32>
    %11 = vector.broadcast %4 : vector<1x24xf32> to vector<8x24xf32>
    %12 = arith.addf %10, %11 : vector<8x24xf32>
    %13 = vector.extract_strided_slice %12 {offsets = [0, 0], sizes = [8, 8], strides = [1, 1]} : vector<8x24xf32> to vector<8x8xf32>
    %14 = vector.extract_strided_slice %12 {offsets = [0, 8], sizes = [8, 8], strides = [1, 1]} : vector<8x24xf32> to vector<8x8xf32>
    %15 = vector.extract_strided_slice %12 {offsets = [0, 16], sizes = [8, 8], strides = [1, 1]} : vector<8x24xf32> to vector<8x8xf32>
    %16 = arith.truncf %13 : vector<8x8xf32> to vector<8x8xbf16>
    %17 = arith.truncf %14 : vector<8x8xf32> to vector<8x8xbf16>
    %cst_9 = arith.constant dense<0.000000e+00> : vector<8x8xf32>
    %18 = tpu.matmul %16, %17, %cst_9 {dimension_numbers = #tpu.dot_dimension_numbers<[1], [1], [0], [0], [0, 0, 1, 0], [], []>} : vector<8x8xbf16>, vector<8x8xbf16>, vector<8x8xf32> -> vector<8x8xf32>
    %cst_10 = arith.constant dense<0xFF800000> : vector<8xf32>
    %19 = vector.multi_reduction <maximumf>, %18, %cst_10 [1] : vector<8x8xf32> to vector<8xf32>
    %20 = vector.shape_cast %19 : vector<8xf32> to vector<8x1xf32>
    %21 = vector.broadcast %20 : vector<8x1xf32> to vector<8x8xf32>
    %22 = arith.subf %18, %21 : vector<8x8xf32>
    %23 = math.exp %22 : vector<8x8xf32>
    %cst_11 = arith.constant dense<0.000000e+00> : vector<8xf32>
    %24 = vector.multi_reduction <add>, %23, %cst_11 [1] : vector<8x8xf32> to vector<8xf32>
    %25 = vector.shape_cast %24 : vector<8xf32> to vector<8x1xf32>
    %26 = arith.truncf %23 : vector<8x8xf32> to vector<8x8xbf16>
    %27 = arith.truncf %15 : vector<8x8xf32> to vector<8x8xbf16>
    %cst_12 = arith.constant dense<0.000000e+00> : vector<8x8xf32>
    %28 = tpu.matmul %26, %27, %cst_12 {dimension_numbers = #tpu.dot_dimension_numbers<[1], [0], [0], [1], [0, 0, 1, 1], [], []>} : vector<8x8xbf16>, vector<8x8xbf16>, vector<8x8xf32> -> vector<8x8xf32>
    %29 = tpu.reciprocal %25 {approx = true} : vector<8x1xf32> -> vector<8x1xf32>
    %30 = vector.broadcast %29 : vector<8x1xf32> to vector<8x8xf32>
    %31 = arith.mulf %28, %30 : vector<8x8xf32>
    %32 = arith.truncf %31 : vector<8x8xf32> to vector<8x8xbf16>
    %33 = vector.extract_strided_slice %6 {offsets = [0, 0], sizes = [8, 32], strides = [1, 1]} : vector<32x32xbf16> to vector<8x32xbf16>
    %cst_13 = arith.constant dense<0.000000e+00> : vector<8x32xf32>
    %34 = tpu.matmul %32, %33, %cst_13 {dimension_numbers = #tpu.dot_dimension_numbers<[1], [0], [0], [1], [0, 0, 1, 1], [], []>} : vector<8x8xbf16>, vector<8x32xbf16>, vector<8x32xf32> -> vector<8x32xf32>
    %35 = arith.addf %7, %34 : vector<8x32xf32>
    %36 = vector.extract_strided_slice %1 {offsets = [0, 8], sizes = [8, 8], strides = [1, 1]} : vector<8x32xf32> to vector<8x8xf32>
    %37 = arith.truncf %36 : vector<8x8xf32> to vector<8x8xbf16>
    %cst_14 = arith.constant dense<0.000000e+00> : vector<8x24xf32>
    %38 = tpu.matmul %37, %3, %cst_14 {dimension_numbers = #tpu.dot_dimension_numbers<[1], [0], [0], [1], [0, 0, 1, 1], [], []>} : vector<8x8xbf16>, vector<8x24xbf16>, vector<8x24xf32> -> vector<8x24xf32>
    %39 = vector.broadcast %4 : vector<1x24xf32> to vector<8x24xf32>
    %40 = arith.addf %38, %39 : vector<8x24xf32>
    %41 = vector.extract_strided_slice %40 {offsets = [0, 0], sizes = [8, 8], strides = [1, 1]} : vector<8x24xf32> to vector<8x8xf32>
    %42 = vector.extract_strided_slice %40 {offsets = [0, 8], sizes = [8, 8], strides = [1, 1]} : vector<8x24xf32> to vector<8x8xf32>
    %43 = vector.extract_strided_slice %40 {offsets = [0, 16], sizes = [8, 8], strides = [1, 1]} : vector<8x24xf32> to vector<8x8xf32>
    %44 = arith.truncf %41 : vector<8x8xf32> to vector<8x8xbf16>
    %45 = arith.truncf %42 : vector<8x8xf32> to vector<8x8xbf16>
    %cst_15 = arith.constant dense<0.000000e+00> : vector<8x8xf32>
    %46 = tpu.matmul %44, %45, %cst_15 {dimension_numbers = #tpu.dot_dimension_numbers<[1], [1], [0], [0], [0, 0, 1, 0], [], []>} : vector<8x8xbf16>, vector<8x8xbf16>, vector<8x8xf32> -> vector<8x8xf32>
    %cst_16 = arith.constant dense<0xFF800000> : vector<8xf32>
    %47 = vector.multi_reduction <maximumf>, %46, %cst_16 [1] : vector<8x8xf32> to vector<8xf32>
    %48 = vector.shape_cast %47 : vector<8xf32> to vector<8x1xf32>
    %49 = vector.broadcast %48 : vector<8x1xf32> to vector<8x8xf32>
    %50 = arith.subf %46, %49 : vector<8x8xf32>
    %51 = math.exp %50 : vector<8x8xf32>
    %cst_17 = arith.constant dense<0.000000e+00> : vector<8xf32>
    %52 = vector.multi_reduction <add>, %51, %cst_17 [1] : vector<8x8xf32> to vector<8xf32>
    %53 = vector.shape_cast %52 : vector<8xf32> to vector<8x1xf32>
    %54 = arith.truncf %51 : vector<8x8xf32> to vector<8x8xbf16>
    %55 = arith.truncf %43 : vector<8x8xf32> to vector<8x8xbf16>
    %cst_18 = arith.constant dense<0.000000e+00> : vector<8x8xf32>
    %56 = tpu.matmul %54, %55, %cst_18 {dimension_numbers = #tpu.dot_dimension_numbers<[1], [0], [0], [1], [0, 0, 1, 1], [], []>} : vector<8x8xbf16>, vector<8x8xbf16>, vector<8x8xf32> -> vector<8x8xf32>
    %57 = tpu.reciprocal %53 {approx = true} : vector<8x1xf32> -> vector<8x1xf32>
    %58 = vector.broadcast %57 : vector<8x1xf32> to vector<8x8xf32>
    %59 = arith.mulf %56, %58 : vector<8x8xf32>
    %60 = arith.truncf %59 : vector<8x8xf32> to vector<8x8xbf16>
    %61 = vector.extract_strided_slice %6 {offsets = [8, 0], sizes = [8, 32], strides = [1, 1]} : vector<32x32xbf16> to vector<8x32xbf16>
    %cst_19 = arith.constant dense<0.000000e+00> : vector<8x32xf32>
    %62 = tpu.matmul %60, %61, %cst_19 {dimension_numbers = #tpu.dot_dimension_numbers<[1], [0], [0], [1], [0, 0, 1, 1], [], []>} : vector<8x8xbf16>, vector<8x32xbf16>, vector<8x32xf32> -> vector<8x32xf32>
    %63 = arith.addf %35, %62 : vector<8x32xf32>
    %64 = vector.extract_strided_slice %1 {offsets = [0, 16], sizes = [8, 8], strides = [1, 1]} : vector<8x32xf32> to vector<8x8xf32>
    %65 = arith.truncf %64 : vector<8x8xf32> to vector<8x8xbf16>
    %cst_20 = arith.constant dense<0.000000e+00> : vector<8x24xf32>
    %66 = tpu.matmul %65, %3, %cst_20 {dimension_numbers = #tpu.dot_dimension_numbers<[1], [0], [0], [1], [0, 0, 1, 1], [], []>} : vector<8x8xbf16>, vector<8x24xbf16>, vector<8x24xf32> -> vector<8x24xf32>
    %67 = vector.broadcast %4 : vector<1x24xf32> to vector<8x24xf32>
    %68 = arith.addf %66, %67 : vector<8x24xf32>
    %69 = vector.extract_strided_slice %68 {offsets = [0, 0], sizes = [8, 8], strides = [1, 1]} : vector<8x24xf32> to vector<8x8xf32>
    %70 = vector.extract_strided_slice %68 {offsets = [0, 8], sizes = [8, 8], strides = [1, 1]} : vector<8x24xf32> to vector<8x8xf32>
    %71 = vector.extract_strided_slice %68 {offsets = [0, 16], sizes = [8, 8], strides = [1, 1]} : vector<8x24xf32> to vector<8x8xf32>
    %72 = arith.truncf %69 : vector<8x8xf32> to vector<8x8xbf16>
    %73 = arith.truncf %70 : vector<8x8xf32> to vector<8x8xbf16>
    %cst_21 = arith.constant dense<0.000000e+00> : vector<8x8xf32>
    %74 = tpu.matmul %72, %73, %cst_21 {dimension_numbers = #tpu.dot_dimension_numbers<[1], [1], [0], [0], [0, 0, 1, 0], [], []>} : vector<8x8xbf16>, vector<8x8xbf16>, vector<8x8xf32> -> vector<8x8xf32>
    %cst_22 = arith.constant dense<0xFF800000> : vector<8xf32>
    %75 = vector.multi_reduction <maximumf>, %74, %cst_22 [1] : vector<8x8xf32> to vector<8xf32>
    %76 = vector.shape_cast %75 : vector<8xf32> to vector<8x1xf32>
    %77 = vector.broadcast %76 : vector<8x1xf32> to vector<8x8xf32>
    %78 = arith.subf %74, %77 : vector<8x8xf32>
    %79 = math.exp %78 : vector<8x8xf32>
    %cst_23 = arith.constant dense<0.000000e+00> : vector<8xf32>
    %80 = vector.multi_reduction <add>, %79, %cst_23 [1] : vector<8x8xf32> to vector<8xf32>
    %81 = vector.shape_cast %80 : vector<8xf32> to vector<8x1xf32>
    %82 = arith.truncf %79 : vector<8x8xf32> to vector<8x8xbf16>
    %83 = arith.truncf %71 : vector<8x8xf32> to vector<8x8xbf16>
    %cst_24 = arith.constant dense<0.000000e+00> : vector<8x8xf32>
    %84 = tpu.matmul %82, %83, %cst_24 {dimension_numbers = #tpu.dot_dimension_numbers<[1], [0], [0], [1], [0, 0, 1, 1], [], []>} : vector<8x8xbf16>, vector<8x8xbf16>, vector<8x8xf32> -> vector<8x8xf32>
    %85 = tpu.reciprocal %81 {approx = true} : vector<8x1xf32> -> vector<8x1xf32>
    %86 = vector.broadcast %85 : vector<8x1xf32> to vector<8x8xf32>
    %87 = arith.mulf %84, %86 : vector<8x8xf32>
    %88 = arith.truncf %87 : vector<8x8xf32> to vector<8x8xbf16>
    %89 = vector.extract_strided_slice %6 {offsets = [16, 0], sizes = [8, 32], strides = [1, 1]} : vector<32x32xbf16> to vector<8x32xbf16>
    %cst_25 = arith.constant dense<0.000000e+00> : vector<8x32xf32>
    %90 = tpu.matmul %88, %89, %cst_25 {dimension_numbers = #tpu.dot_dimension_numbers<[1], [0], [0], [1], [0, 0, 1, 1], [], []>} : vector<8x8xbf16>, vector<8x32xbf16>, vector<8x32xf32> -> vector<8x32xf32>
    %91 = arith.addf %63, %90 : vector<8x32xf32>
    %92 = vector.extract_strided_slice %1 {offsets = [0, 24], sizes = [8, 8], strides = [1, 1]} : vector<8x32xf32> to vector<8x8xf32>
    %93 = arith.truncf %92 : vector<8x8xf32> to vector<8x8xbf16>
    %cst_26 = arith.constant dense<0.000000e+00> : vector<8x24xf32>
    %94 = tpu.matmul %93, %3, %cst_26 {dimension_numbers = #tpu.dot_dimension_numbers<[1], [0], [0], [1], [0, 0, 1, 1], [], []>} : vector<8x8xbf16>, vector<8x24xbf16>, vector<8x24xf32> -> vector<8x24xf32>
    %95 = vector.broadcast %4 : vector<1x24xf32> to vector<8x24xf32>
    %96 = arith.addf %94, %95 : vector<8x24xf32>
    %97 = vector.extract_strided_slice %96 {offsets = [0, 0], sizes = [8, 8], strides = [1, 1]} : vector<8x24xf32> to vector<8x8xf32>
    %98 = vector.extract_strided_slice %96 {offsets = [0, 8], sizes = [8, 8], strides = [1, 1]} : vector<8x24xf32> to vector<8x8xf32>
    %99 = vector.extract_strided_slice %96 {offsets = [0, 16], sizes = [8, 8], strides = [1, 1]} : vector<8x24xf32> to vector<8x8xf32>
    %100 = arith.truncf %97 : vector<8x8xf32> to vector<8x8xbf16>
    %101 = arith.truncf %98 : vector<8x8xf32> to vector<8x8xbf16>
    %cst_27 = arith.constant dense<0.000000e+00> : vector<8x8xf32>
    %102 = tpu.matmul %100, %101, %cst_27 {dimension_numbers = #tpu.dot_dimension_numbers<[1], [1], [0], [0], [0, 0, 1, 0], [], []>} : vector<8x8xbf16>, vector<8x8xbf16>, vector<8x8xf32> -> vector<8x8xf32>
    %cst_28 = arith.constant dense<0xFF800000> : vector<8xf32>
    %103 = vector.multi_reduction <maximumf>, %102, %cst_28 [1] : vector<8x8xf32> to vector<8xf32>
    %104 = vector.shape_cast %103 : vector<8xf32> to vector<8x1xf32>
    %105 = vector.broadcast %104 : vector<8x1xf32> to vector<8x8xf32>
    %106 = arith.subf %102, %105 : vector<8x8xf32>
    %107 = math.exp %106 : vector<8x8xf32>
    %cst_29 = arith.constant dense<0.000000e+00> : vector<8xf32>
    %108 = vector.multi_reduction <add>, %107, %cst_29 [1] : vector<8x8xf32> to vector<8xf32>
    %109 = vector.shape_cast %108 : vector<8xf32> to vector<8x1xf32>
    %110 = arith.truncf %107 : vector<8x8xf32> to vector<8x8xbf16>
    %111 = arith.truncf %99 : vector<8x8xf32> to vector<8x8xbf16>
    %cst_30 = arith.constant dense<0.000000e+00> : vector<8x8xf32>
    %112 = tpu.matmul %110, %111, %cst_30 {dimension_numbers = #tpu.dot_dimension_numbers<[1], [0], [0], [1], [0, 0, 1, 1], [], []>} : vector<8x8xbf16>, vector<8x8xbf16>, vector<8x8xf32> -> vector<8x8xf32>
    %113 = tpu.reciprocal %109 {approx = true} : vector<8x1xf32> -> vector<8x1xf32>
    %114 = vector.broadcast %113 : vector<8x1xf32> to vector<8x8xf32>
    %115 = arith.mulf %112, %114 : vector<8x8xf32>
    %116 = arith.truncf %115 : vector<8x8xf32> to vector<8x8xbf16>
    %117 = vector.extract_strided_slice %6 {offsets = [24, 0], sizes = [8, 32], strides = [1, 1]} : vector<32x32xbf16> to vector<8x32xbf16>
    %cst_31 = arith.constant dense<0.000000e+00> : vector<8x32xf32>
    %118 = tpu.matmul %116, %117, %cst_31 {dimension_numbers = #tpu.dot_dimension_numbers<[1], [0], [0], [1], [0, 0, 1, 1], [], []>} : vector<8x8xbf16>, vector<8x32xbf16>, vector<8x32xf32> -> vector<8x32xf32>
    %119 = arith.addf %91, %118 : vector<8x32xf32>
    %c0_32 = arith.constant 0 : index
    %c0_33 = arith.constant 0 : index
    %120 = vector.load %arg5[%c0_32, %c0_33] : memref<1x32xf32, #tpu.memory_space<vmem>>, vector<1x32xf32>
    %121 = vector.broadcast %120 : vector<1x32xf32> to vector<8x32xf32>
    %122 = arith.addf %119, %121 : vector<8x32xf32>
    %c0_34 = arith.constant 0 : index
    %c0_35 = arith.constant 0 : index
    %c0_36 = arith.constant 0 : index
    %123 = vector.load %arg6[%c0_34, %c0_35, %c0_36] : memref<1x8x32xf32, #tpu.memory_space<vmem>>, vector<1x8x32xf32>
    %124 = vector.shape_cast %123 : vector<1x8x32xf32> to vector<8x32xf32>
    %125 = vector.shape_cast %122 : vector<8x32xf32> to vector<1x8x32xf32>
    tpu.vector_store %arg6[%c0_34, %c0_35, %c0_36], %125 {strides = array<i32>} : memref<1x8x32xf32, #tpu.memory_space<vmem>>, vector<1x8x32xf32>,
    return
  }
  func.func @transform_0(%arg0: i32) -> (i32, i32, i32) {
    %c0_i32 = arith.constant 0 : i32
    %c0_i32_0 = arith.constant 0 : i32
    %c0_i32_1 = arith.constant 0 : i32
    return %arg0, %c0_i32, %c0_i32_0 : i32, i32, i32
  }
  func.func @transform_1(%arg0: i32) -> (i32, i32) {
    %c0_i32 = arith.constant 0 : i32
    %c0_i32_0 = arith.constant 0 : i32
    %c0_i32_1 = arith.constant 0 : i32
    return %c0_i32, %c0_i32_0 : i32, i32
  }
  func.func @transform_2(%arg0: i32) -> (i32, i32) {
    %c0_i32 = arith.constant 0 : i32
    %c0_i32_0 = arith.constant 0 : i32
    %c0_i32_1 = arith.constant 0 : i32
    return %c0_i32, %c0_i32_0 : i32, i32
  }
  func.func @transform_3(%arg0: i32) -> (i32, i32) {
    %c0_i32 = arith.constant 0 : i32
    %c0_i32_0 = arith.constant 0 : i32
    %c0_i32_1 = arith.constant 0 : i32
    return %c0_i32, %c0_i32_0 : i32, i32
  }
  func.func @transform_4(%arg0: i32) -> (i32, i32) {
    %c0_i32 = arith.constant 0 : i32
    %c0_i32_0 = arith.constant 0 : i32
    %c0_i32_1 = arith.constant 0 : i32
    return %c0_i32, %c0_i32_0 : i32, i32
  }
  func.func @transform_5(%arg0: i32) -> (i32, i32, i32) {
    %c0_i32 = arith.constant 0 : i32
    %c0_i32_0 = arith.constant 0 : i32
    %c0_i32_1 = arith.constant 0 : i32
    return %arg0, %c0_i32, %c0_i32_0 : i32, i32, i32
  }
}

</mosaic_0001>

<llo_original>
// kernel: tpu_custom_call.1
$region0: #{tpu_custom_call.1}
  #allocation0 [shape = 'u32[]', space=smem, size = 0x4, offset = 0x4, fixed_abs, tag = 'smem constant byte address 0x4 - core index']
  #allocation1 [shape = 'u32[72,128]{1,0:T(1,128)}', space=vmem, size = 0x9000, scoped, tag = 'internal scratch']
  %s0 = inlined_call_operand.hbm [shape: f32[2,8,32], index: 0, kind: input, shape index: {}]
  %s1 = inlined_call_operand.hbm [shape: f32[8,24], index: 1, kind: input, shape index: {}]
  %s2 = inlined_call_operand.vmem [shape: f32[1,24], index: 2, kind: input, shape index: {}]
  %s3 = inlined_call_operand.hbm [shape: f32[32,32], index: 3, kind: input, shape index: {}]
  %s4 = inlined_call_operand.vmem [shape: f32[1,32], index: 4, kind: input, shape index: {}]
  %s5 = inlined_call_operand.hbm [shape: f32[2,8,32], index: 5, kind: output, shape index: {}]
  %s6 = sld [smem:[#allocation0]]
  $region65: #{tpu_custom_call.1} parent=0
    _
  %s8 = ssub.s32 1, %s6
  %s9 = scalar_select 0, %s8, %s6
  $region1: #{tpu_custom_call.1} parent=0
    #allocation2 [shape = 'u8[8192]{0}', space=vmem, size = 0x2000, scoped, tag = 'input window, operand 0']
    #allocation3 [shape = 's32[2]{0}', space=sflag, size = 0x8, scoped, tag = 'scoped memory for tpu_custom_call.1']
    #allocation4 [shape = 's32[2]{0}', space=sflag, size = 0x8, scoped, tag = 'scoped memory for tpu_custom_call.1']
    #allocation5 [shape = 'u8[4096]{0}', space=vmem, size = 0x1000, scoped, tag = 'input window, operand 1, single buffered']
    #allocation6 [shape = 's32[1]{0}', space=sflag, size = 0x4, scoped, tag = 'scoped memory for tpu_custom_call.1']
    #allocation7 [shape = 'u8[16384]{0}', space=vmem, size = 0x4000, scoped, tag = 'input window, operand 3, single buffered']
    #allocation8 [shape = 'u8[8192]{0}', space=vmem, size = 0x2000, scoped, tag = 'output window, operand 0']
    %10 = vsyncpa [#allocation3], 0
    %s11 = scalar_lea.sflag [#allocation3], 1
    %12 = vsyncpa %s11, 0
    %13 = vsyncpa [#allocation6], 0
    %14 = vsyncpa [#allocation4], 0
    %s15 = scalar_lea.sflag [#allocation4], 1
    %16 = vsyncpa %s15, 0
    loop: start=0, step=1, limit=4
    $region2: #{tpu_custom_call.1} parent=1 // loop_pre_header
      _
    $region3: #{tpu_custom_call.1} parent=1 // loop_header
      %s18 = sphi 0, %s22
      %p19 = scmp.ge.s32.totalorder %s18, 4
      %s28 = sphi 0, %s30
      %s31 = sphi 0, %s28
      %s32 = sphi 0, %s31
      %s48 = sphi 0, %s32
      %s52 = sphi 0, %s52
      %s54 = sphi 0, %s52
      %s55 = sphi 0, %s54
      %s69 = sphi 0, %s55
      %s73 = sphi 0, %s73
      %s75 = sphi 0, %s73
      %s76 = sphi 0, %s75
      %s90 = sphi 0, %s76
      %s94 = sphi 0, %s94
      %s96 = sphi 0, %s94
      %s97 = sphi 0, %s96
      %s111 = sphi 0, %s97
      %s115 = sphi 0, %s115
      %s117 = sphi 0, %s115
      %s118 = sphi 0, %s117
      %s132 = sphi 0, %s118
      %s138 = sphi 0, %s140
      %s141 = sphi 0, %s138
      %s142 = sphi 0, %s141
      %s158 = sphi 0, %s142
    $region4: #{tpu_custom_call.1} parent=1 // loop_header_branch
      %21 = sbr.rel (%p19) target = $region8
    $region5: #{tpu_custom_call.1} parent=1 // loop_body
      %s23 = ssub.s32 %s18, 1
      %s24 = ssub.s32 %s18, 2
      %s25 = sadd.s32 %s18, 1
      %s26 = ssub.s32 %s18, %s25
      %p27 = scmp.eq.s32.totalorder %s26, 0
      %s29 = sadd.s32 %s28, 1
      %s30 = scalar_select %p27, %s28, %s29
      %p33 = pneg %p27
      %p34 = scmp.eq.s32.totalorder %s18, 1
      %p35 = por %p33, %p34
      %p36 = scmp.ne.s32.totalorder %s28, %s31
      %p37 = scmp.eq.s32.totalorder %s18, 0
      %p38 = por %p36, %p37
      %p39 = scmp.ne.s32.totalorder %s28, %s31
      %p40 = scmp.eq.s32.totalorder %s23, 1
      %p41 = por %p39, %p40
      %p42 = scmp.ne.s32.totalorder %s31, %s32
      %p43 = scmp.eq.s32.totalorder %s23, 0
      %p44 = por %p42, %p43
      %p45 = scmp.ne.s32.totalorder %s31, %s32
      %p46 = scmp.eq.s32.totalorder %s24, 1
      %p47 = por %p45, %p46
      %p49 = scmp.ne.s32.totalorder %s32, %s48
      %p50 = scmp.eq.s32.totalorder %s24, 0
      %p51 = por %p49, %p50
      %s53 = sadd.s32 %s52, 1
      %p56 = scmp.eq.s32.totalorder %s18, 1
      %p57 = scmp.ne.s32.totalorder %s52, %s54
      %p58 = scmp.eq.s32.totalorder %s18, 0
      %p59 = por %p57, %p58
      %p60 = scmp.ne.s32.totalorder %s52, %s54
      %p61 = scmp.eq.s32.totalorder %s23, 1
      %p62 = por %p60, %p61
      %p63 = scmp.ne.s32.totalorder %s54, %s55
      %p64 = scmp.eq.s32.totalorder %s23, 0
      %p65 = por %p63, %p64
      %p66 = scmp.ne.s32.totalorder %s54, %s55
      %p67 = scmp.eq.s32.totalorder %s24, 1
      %p68 = por %p66, %p67
      %p70 = scmp.ne.s32.totalorder %s55, %s69
      %p71 = scmp.eq.s32.totalorder %s24, 0
      %p72 = por %p70, %p71
      %s74 = sadd.s32 %s73, 1
      %p77 = scmp.eq.s32.totalorder %s18, 1
      %p78 = scmp.ne.s32.totalorder %s73, %s75
      %p79 = scmp.eq.s32.totalorder %s18, 0
      %p80 = por %p78, %p79
      %p81 = scmp.ne.s32.totalorder %s73, %s75
      %p82 = scmp.eq.s32.totalorder %s23, 1
      %p83 = por %p81, %p82
      %p84 = scmp.ne.s32.totalorder %s75, %s76
      %p85 = scmp.eq.s32.totalorder %s23, 0
      %p86 = por %p84, %p85
      %p87 = scmp.ne.s32.totalorder %s75, %s76
      %p88 = scmp.eq.s32.totalorder %s24, 1
      %p89 = por %p87, %p88
      %p91 = scmp.ne.s32.totalorder %s76, %s90
      %p92 = scmp.eq.s32.totalorder %s24, 0
      %p93 = por %p91, %p92
      %s95 = sadd.s32 %s94, 1
      %p98 = scmp.eq.s32.totalorder %s18, 1
      %p99 = scmp.ne.s32.totalorder %s94, %s96
      %p100 = scmp.eq.s32.totalorder %s18, 0
      %p101 = por %p99, %p100
      %p102 = scmp.ne.s32.totalorder %s94, %s96
      %p103 = scmp.eq.s32.totalorder %s23, 1
      %p104 = por %p102, %p103
      %p105 = scmp.ne.s32.totalorder %s96, %s97
      %p106 = scmp.eq.s32.totalorder %s23, 0
      %p107 = por %p105, %p106
      %p108 = scmp.ne.s32.totalorder %s96, %s97
      %p109 = scmp.eq.s32.totalorder %s24, 1
      %p110 = por %p108, %p109
      %p112 = scmp.ne.s32.totalorder %s97, %s111
      %p113 = scmp.eq.s32.totalorder %s24, 0
      %p114 = por %p112, %p113
      %s116 = sadd.s32 %s115, 1
      %p119 = scmp.eq.s32.totalorder %s18, 1
      %p120 = scmp.ne.s32.totalorder %s115, %s117
      %p121 = scmp.eq.s32.totalorder %s18, 0
      %p122 = por %p120, %p121
      %p123 = scmp.ne.s32.totalorder %s115, %s117
      %p124 = scmp.eq.s32.totalorder %s23, 1
      %p125 = por %p123, %p124
      %p126 = scmp.ne.s32.totalorder %s117, %s118
      %p127 = scmp.eq.s32.totalorder %s23, 0
      %p128 = por %p126, %p127
      %p129 = scmp.ne.s32.totalorder %s117, %s118
      %p130 = scmp.eq.s32.totalorder %s24, 1
      %p131 = por %p129, %p130
      %p133 = scmp.ne.s32.totalorder %s118, %s132
      %p134 = scmp.eq.s32.totalorder %s24, 0
      %p135 = por %p133, %p134
      %s136 = ssub.s32 %s18, %s25
      %p137 = scmp.eq.s32.totalorder %s136, 0
      %s139 = sadd.s32 %s138, 1
      %s140 = scalar_select %p137, %s138, %s139
      %p143 = pneg %p137
      %p144 = scmp.eq.s32.totalorder %s18, 1
      %p145 = por %p143, %p144
      %p146 = scmp.ne.s32.totalorder %s138, %s141
      %p147 = scmp.eq.s32.totalorder %s18, 0
      %p148 = por %p146, %p147
      %p149 = scmp.ne.s32.totalorder %s138, %s141
      %p150 = scmp.eq.s32.totalorder %s23, 1
      %p151 = por %p149, %p150
      %p152 = scmp.ne.s32.totalorder %s141, %s142
      %p153 = scmp.eq.s32.totalorder %s23, 0
      %p154 = por %p152, %p153
      %p155 = scmp.ne.s32.totalorder %s141, %s142
      %p156 = scmp.eq.s32.totalorder %s24, 1
      %p157 = por %p155, %p156
      %p159 = scmp.ne.s32.totalorder %s142, %s158
      %p160 = scmp.eq.s32.totalorder %s24, 0
      %p161 = por %p159, %p160
      %p162 = scmp.le.s32.totalorder 1, %s18
      %p163 = scmp.lt.s32.totalorder %s18, 3
      %p164 = pnand %p162, %p163
      %p165 = pneg %p164
      // Predicated region
      $region9: #{tpu_custom_call.1} parent=5 // pred_check
        _
      $region10: #{tpu_custom_call.1} parent=5 // pred_check_branch
        %167 = sbr.rel (%p164) target = $region12
      $region11: #{tpu_custom_call.1} parent=5 // pred_region
        %s168 = ssub.s32 %s18, 1
        // Predicated region
        $region13: #{tpu_custom_call.1} parent=11 // pred_check
          %p169 = pneg %p65
        $region14: #{tpu_custom_call.1} parent=11 // pred_check_branch
          %171 = sbr.rel (%p169) target = $region16
        $region15: #{tpu_custom_call.1} parent=11 // pred_region
          %173 = vsyncadd [#allocation6], 0
          %s175 = sshll.u32 %s1, 4
          %s176 = int_to_ptr.hbm [resolvable:$true] %s175
          %s177 = sshll.u32 [#allocation5], 4
          %s178 = int_to_ptr.vmem [resolvable:$true] %s177
          %180 = dma.hbm_to_vmem [thread:$0]  %s176, 128, %s178, [#allocation6]
        $region16: #{tpu_custom_call.1} parent=11 // pred_fallthru
          _
        // Predicated region
        $region17: #{tpu_custom_call.1} parent=11 // pred_check
          %p181 = pneg %p86
        $region18: #{tpu_custom_call.1} parent=11 // pred_check_branch
          %183 = sbr.rel (%p181) target = $region20
        $region19: #{tpu_custom_call.1} parent=11 // pred_region
          _
        $region20: #{tpu_custom_call.1} parent=11 // pred_fallthru
          _
        // Predicated region
        $region21: #{tpu_custom_call.1} parent=11 // pred_check
          %p184 = pneg %p107
        $region22: #{tpu_custom_call.1} parent=11 // pred_check_branch
          %186 = sbr.rel (%p184) target = $region24
        $region23: #{tpu_custom_call.1} parent=11 // pred_region
          %188 = vsyncadd [#allocation6], 0
          %s189 = sshll.u32 %s3, 4
          %s190 = int_to_ptr.hbm [resolvable:$true] %s189
          %s191 = sshll.u32 [#allocation7], 4
          %s192 = int_to_ptr.vmem [resolvable:$true] %s191
          %197 = dma.hbm_to_vmem [thread:$0]  %s190, 512, %s192, [#allocation6], 128, 128, 8
        $region24: #{tpu_custom_call.1} parent=11 // pred_fallthru
          _
        // Predicated region
        $region25: #{tpu_custom_call.1} parent=11 // pred_check
          %p198 = pneg %p128
        $region26: #{tpu_custom_call.1} parent=11 // pred_check_branch
          %200 = sbr.rel (%p198) target = $region28
        $region27: #{tpu_custom_call.1} parent=11 // pred_region
          _
        $region28: #{tpu_custom_call.1} parent=11 // pred_fallthru
          _
      $region12: #{tpu_custom_call.1} parent=5 // pred_fallthru
        _
      %p201 = scmp.lt.s32.totalorder %s18, 2
      // Predicated region
      $region29: #{tpu_custom_call.1} parent=5 // pred_check
        %p202 = pneg %p201
      $region30: #{tpu_custom_call.1} parent=5 // pred_check_branch
        %204 = sbr.rel (%p202) target = $region32
      $region31: #{tpu_custom_call.1} parent=5 // pred_region
        // Predicated region
        $region33: #{tpu_custom_call.1} parent=31 // pred_check
          %p205 = pneg %p38
        $region34: #{tpu_custom_call.1} parent=31 // pred_check_branch
          %207 = sbr.rel (%p205) target = $region36
        $region35: #{tpu_custom_call.1} parent=31 // pred_region
          %s208 = sand.u32 %s28, 1
          %s209 = scalar_lea.sflag [#allocation3], %s208
          %s210 = sand.u32 %s28, 1
          %s211 = smul.addr %s210, 8
          %s212 = scalar_lea.vmem [#allocation2], %s211
          %214 = vsyncadd %s209, 0
          %s215 = smul.addr %s18, 8
          %s216 = scalar_lea.hbm %s0, %s215
          %s218 = sshll.u32 %s216, 4
          %s219 = int_to_ptr.hbm [resolvable:$true] %s218
          %s220 = sshll.u32 %s212, 4
          %s221 = int_to_ptr.vmem [resolvable:$true] %s220
          %223 = dma.hbm_to_vmem [thread:$0]  %s219, 128, %s221, %s209
        $region36: #{tpu_custom_call.1} parent=31 // pred_fallthru
          _
      $region32: #{tpu_custom_call.1} parent=5 // pred_fallthru
        _
      %p224 = scmp.le.s32.totalorder 1, %s18
      %p225 = scmp.lt.s32.totalorder %s18, 3
      %p226 = pnand %p224, %p225
      %p227 = pneg %p226
      // Predicated region
      $region37: #{tpu_custom_call.1} parent=5 // pred_check
        _
      $region38: #{tpu_custom_call.1} parent=5 // pred_check_branch
        %229 = sbr.rel (%p226) target = $region40
      $region39: #{tpu_custom_call.1} parent=5 // pred_region
        %s230 = ssub.s32 %s18, 1
        %s231 = sand.u32 %s31, 1
        %s232 = scalar_lea.sflag [#allocation3], %s231
        %s233 = sand.u32 %s31, 1
        %s234 = smul.addr %s233, 8
        %s235 = scalar_lea.vmem [#allocation2], %s234
        // Predicated region
        $region41: #{tpu_custom_call.1} parent=39 // pred_check
          %p236 = pneg %p44
        $region42: #{tpu_custom_call.1} parent=39 // pred_check_branch
          %238 = sbr.rel (%p236) target = $region44
        $region43: #{tpu_custom_call.1} parent=39 // pred_region
          %240 = dma.done %s232, 128
        $region44: #{tpu_custom_call.1} parent=39 // pred_fallthru
          _
        // Predicated region
        $region45: #{tpu_custom_call.1} parent=39 // pred_check
          %p241 = pneg %p65
        $region46: #{tpu_custom_call.1} parent=39 // pred_check_branch
          %243 = sbr.rel (%p241) target = $region48
        $region47: #{tpu_custom_call.1} parent=39 // pred_region
          %245 = dma.done [#allocation6], 128
        $region48: #{tpu_custom_call.1} parent=39 // pred_fallthru
          _
        // Predicated region
        $region49: #{tpu_custom_call.1} parent=39 // pred_check
          %p246 = pneg %p107
        $region50: #{tpu_custom_call.1} parent=39 // pred_check_branch
          %248 = sbr.rel (%p246) target = $region52
        $region51: #{tpu_custom_call.1} parent=39 // pred_region
          %250 = dma.done [#allocation6], 512
        $region52: #{tpu_custom_call.1} parent=39 // pred_fallthru
          _
        %s251 = sand.u32 %s31, 1
        %s252 = scalar_lea.sflag [#allocation3], %s251
        %s253 = sand.u32 %s31, 1
        %s254 = smul.addr %s253, 8
        %s255 = scalar_lea.vmem [#allocation2], %s254
        %p256 = pneg %p44
        %p257 = pneg %p41
        %p258 = pneg %p65
        %p259 = pneg %p62
        %p260 = pneg %p86
        %p261 = pneg %p83
        %p262 = pneg %p107
        %p263 = pneg %p104
        %p264 = pneg %p128
        %p265 = pneg %p125
        %p266 = pneg %p154
        %p267 = pneg %p151
        %s268 = sand.u32 %s141, 1
        %s269 = scalar_lea.sflag [#allocation4], %s268
        %s270 = sand.u32 %s141, 1
        %s271 = smul.addr %s270, 8
        %s272 = scalar_lea.vmem [#allocation8], %s271
        %v274 = vld [vmem:[%s235] sm:$0xff]
        %v275 = vld [vmem:[#allocation5] sm:$0xff]
        %v276 = vpack.c.bf16 %v275, %v275
        %v277 = vld [vmem:[%s2] sm:$0x1]
        %v278 = vld [vmem:[#allocation7] sm:$0xff]
        %v279 = vld [vmem:[#allocation7 + $0x8] sm:$0xff]
        %v280 = vld [vmem:[#allocation7 + $0x10] sm:$0xff]
        %v281 = vld [vmem:[#allocation7 + $0x18] sm:$0xff]
        %v282 = vpack.c.bf16 %v278, %v278
        %v283 = vpack.c.bf16 %v279, %v279
        %v284 = vpack.c.bf16 %v280, %v280
        %v285 = vpack.c.bf16 %v281, %v281
        %v286 = vpack.c.bf16 %v274, %v274
        %v288 = vperm.slane %v277, 0
        %vm290 = vcmask 64512
        %v292 = vsel %vm290, %v286, 0
        %vm294 = vcmask 1043456
        %v296 = vsel %vm294, %v276, 0
        %298 = vmatpush.bf16.msra.mxu0 0
        %299 = vmatpush.bf16.msra.mxu0 0
        %300 = vmatpush.bf16.msra.mxu0 0
        %301 = vmatpush.bf16.msra.mxu0 0
        %302 = vmatpush.bf16.msra.mxu0 0
        %303 = vmatpush.bf16.msra.mxu0 0
        %304 = vmatpush.bf16.msra.mxu0 0
        %305 = vmatpush.bf16.msra.mxu0 %v296
        %306 = vmatmul.bf16.gmra.mxu0 %v292
        %v307 = vpop.f32.mrf.mxu0
        %v308 = vadd.f32 %v288, %v307
        %v309 = vpop.f32.mrf.mxu0
        %310 = vdwg.mxu0
        %v311 = vpack.c.bf16 %v308, %v308
        %313 = vrot.lane.b32.xlu0 %v311, 120
        %v314 = vpop.permute.xlu0 %313
        %v316 = vsel %vm290, %v311, 0
        %v319 = vsel %vm290, %v314, 0
        %321 = vmatpush.bf16.xpose.msra.mxu0 0
        %322 = vmatpush.bf16.xpose.msra.mxu0 0
        %323 = vmatpush.bf16.xpose.msra.mxu0 0
        %324 = vmatpush.bf16.xpose.msra.mxu0 0
        %325 = vmatpush.bf16.xpose.msra.mxu0 0
        %326 = vmatpush.bf16.xpose.msra.mxu0 0
        %327 = vmatpush.bf16.xpose.msra.mxu0 0
        %328 = vmatpush.bf16.xpose.msra.mxu0 %v319
        %329 = vmatmul.bf16.gmra.mxu0 %v316
        %v330 = vpop.f32.mrf.mxu0
        %v331 = vadd.f32 0.0, %v330
        %v332 = vpop.f32.mrf.mxu0
        %333 = vdwg.mxu0
        %v334 = vsel %vm290, %v331, -inf
        %335 = vmax.xlane.f32.xlu0 %v334
        %v336 = vpop.xlane.xlu0 %335
        %v337 = vsub.f32 %v331, %v336
        %v338 = vmul.f32 %v337, 1.442695
        %v339 = vpow.pop %v338
        %v340 = vsel %vm290, %v339, 0.0
        %341 = vadd.xlane.f32.xlu0 %v340
        %v342 = vpop.xlane.xlu0 %341
        %v343 = vpack.c.bf16 %v339, %v339
        %344 = vrot.lane.b32.xlu0 %v311, 112
        %v345 = vpop.permute.xlu0 %344
        %v347 = vsel %vm290, %v343, 0
        %v350 = vsel %vm294, %v345, 0
        %352 = vmatpush.bf16.msra.mxu0 0
        %353 = vmatpush.bf16.msra.mxu0 0
        %354 = vmatpush.bf16.msra.mxu0 0
        %355 = vmatpush.bf16.msra.mxu0 0
        %356 = vmatpush.bf16.msra.mxu0 0
        %357 = vmatpush.bf16.msra.mxu0 0
        %358 = vmatpush.bf16.msra.mxu0 0
        %359 = vmatpush.bf16.msra.mxu0 %v350
        %360 = vmatmul.bf16.gmra.mxu0 %v347
        %v361 = vpop.f32.mrf.mxu0
        %v362 = vadd.f32 0.0, %v361
        %v363 = vpop.f32.mrf.mxu0
        %364 = vdwg.mxu0
        %v365 = vrcp.pop %v342
        %v366 = vmul.f32 %v362, %v365
        %v367 = vpack.c.bf16 %v366, %v366
        %369 = vrot.lane.b32.xlu0 %v286, 120
        %v370 = vpop.permute.xlu0 %369
        %v372 = vsel %vm290, %v370, 0
        %374 = vmatpush.bf16.msra.mxu0 0
        %375 = vmatpush.bf16.msra.mxu0 0
        %376 = vmatpush.bf16.msra.mxu0 0
        %377 = vmatpush.bf16.msra.mxu0 0
        %378 = vmatpush.bf16.msra.mxu0 0
        %379 = vmatpush.bf16.msra.mxu0 0
        %380 = vmatpush.bf16.msra.mxu0 0
        %381 = vmatpush.bf16.msra.mxu0 %v296
        %382 = vmatmul.bf16.gmra.mxu0 %v372
        %v383 = vpop.f32.mrf.mxu0
        %v384 = vadd.f32 %v288, %v383
        %v385 = vpop.f32.mrf.mxu0
        %386 = vdwg.mxu0
        %v387 = vpack.c.bf16 %v384, %v384
        %389 = vrot.lane.b32.xlu0 %v387, 120
        %v390 = vpop.permute.xlu0 %389
        %v392 = vsel %vm290, %v387, 0
        %v395 = vsel %vm290, %v390, 0
        %397 = vmatpush.bf16.xpose.msra.mxu0 0
        %398 = vmatpush.bf16.xpose.msra.mxu0 0
        %399 = vmatpush.bf16.xpose.msra.mxu0 0
        %400 = vmatpush.bf16.xpose.msra.mxu0 0
        %401 = vmatpush.bf16.xpose.msra.mxu0 0
        %402 = vmatpush.bf16.xpose.msra.mxu0 0
        %403 = vmatpush.bf16.xpose.msra.mxu0 0
        %404 = vmatpush.bf16.xpose.msra.mxu0 %v395
        %405 = vmatmul.bf16.gmra.mxu0 %v392
        %v406 = vpop.f32.mrf.mxu0
        %v407 = vadd.f32 0.0, %v406
        %v408 = vpop.f32.mrf.mxu0
        %409 = vdwg.mxu0
        %v410 = vsel %vm290, %v407, -inf
        %411 = vmax.xlane.f32.xlu0 %v410
        %v412 = vpop.xlane.xlu0 %411
        %v413 = vsub.f32 %v407, %v412
        %v414 = vmul.f32 %v413, 1.442695
        %v415 = vpow.pop %v414
        %v416 = vsel %vm290, %v415, 0.0
        %417 = vadd.xlane.f32.xlu0 %v416
        %v418 = vpop.xlane.xlu0 %417
        %v419 = vpack.c.bf16 %v415, %v415
        %420 = vrot.lane.b32.xlu0 %v387, 112
        %v421 = vpop.permute.xlu0 %420
        %v423 = vsel %vm290, %v419, 0
        %v426 = vsel %vm294, %v421, 0
        %428 = vmatpush.bf16.msra.mxu0 0
        %429 = vmatpush.bf16.msra.mxu0 0
        %430 = vmatpush.bf16.msra.mxu0 0
        %431 = vmatpush.bf16.msra.mxu0 0
        %432 = vmatpush.bf16.msra.mxu0 0
        %433 = vmatpush.bf16.msra.mxu0 0
        %434 = vmatpush.bf16.msra.mxu0 0
        %435 = vmatpush.bf16.msra.mxu0 %v426
        %436 = vmatmul.bf16.gmra.mxu0 %v423
        %v437 = vpop.f32.mrf.mxu0
        %v438 = vadd.f32 0.0, %v437
        %v439 = vpop.f32.mrf.mxu0
        %440 = vdwg.mxu0
        %v441 = vrcp.pop %v418
        %v442 = vmul.f32 %v438, %v441
        %v443 = vpack.c.bf16 %v442, %v442
        %v445 = vsel %vm290, %v443, 0
        %v448 = vsel %vm294, %v283, 0
        %450 = vmatpush.bf16.msra.mxu0 0
        %451 = vmatpush.bf16.msra.mxu0 0
        %452 = vmatpush.bf16.msra.mxu0 0
        %453 = vmatpush.bf16.msra.mxu0 0
        %454 = vmatpush.bf16.msra.mxu0 0
        %455 = vmatpush.bf16.msra.mxu0 0
        %456 = vmatpush.bf16.msra.mxu0 0
        %457 = vmatpush.bf16.msra.mxu0 %v448
        %458 = vmatmul.bf16.gmra.mxu0 %v445
        %v459 = vpop.f32.mrf.mxu0
        %v460 = vadd.f32 0.0, %v459
        %v461 = vpop.f32.mrf.mxu0
        %462 = vdwg.mxu0
        %v464 = vsel %vm290, %v367, 0
        %v467 = vsel %vm294, %v282, 0
        %469 = vmatpush.bf16.msra.mxu0 0
        %470 = vmatpush.bf16.msra.mxu0 0
        %471 = vmatpush.bf16.msra.mxu0 0
        %472 = vmatpush.bf16.msra.mxu0 0
        %473 = vmatpush.bf16.msra.mxu0 0
        %474 = vmatpush.bf16.msra.mxu0 0
        %475 = vmatpush.bf16.msra.mxu0 0
        %476 = vmatpush.bf16.msra.mxu0 %v467
        %477 = vmatmul.bf16.gmra.mxu0 %v464
        %v478 = vpop.f32.mrf.mxu0
        %v479 = vadd.f32 %v460, %v478
        %v480 = vpop.f32.mrf.mxu0
        %481 = vdwg.mxu0
        %482 = vrot.lane.b32.xlu0 %v286, 112
        %v483 = vpop.permute.xlu0 %482
        %v485 = vsel %vm290, %v483, 0
        %487 = vmatpush.bf16.msra.mxu0 0
        %488 = vmatpush.bf16.msra.mxu0 0
        %489 = vmatpush.bf16.msra.mxu0 0
        %490 = vmatpush.bf16.msra.mxu0 0
        %491 = vmatpush.bf16.msra.mxu0 0
        %492 = vmatpush.bf16.msra.mxu0 0
        %493 = vmatpush.bf16.msra.mxu0 0
        %494 = vmatpush.bf16.msra.mxu0 %v296
        %495 = vmatmul.bf16.gmra.mxu0 %v485
        %v496 = vpop.f32.mrf.mxu0
        %v497 = vadd.f32 %v288, %v496
        %v498 = vpop.f32.mrf.mxu0
        %499 = vdwg.mxu0
        %v500 = vpack.c.bf16 %v497, %v497
        %502 = vrot.lane.b32.xlu0 %v500, 120
        %v503 = vpop.permute.xlu0 %502
        %v505 = vsel %vm290, %v500, 0
        %v508 = vsel %vm290, %v503, 0
        %510 = vmatpush.bf16.xpose.msra.mxu0 0
        %511 = vmatpush.bf16.xpose.msra.mxu0 0
        %512 = vmatpush.bf16.xpose.msra.mxu0 0
        %513 = vmatpush.bf16.xpose.msra.mxu0 0
        %514 = vmatpush.bf16.xpose.msra.mxu0 0
        %515 = vmatpush.bf16.xpose.msra.mxu0 0
        %516 = vmatpush.bf16.xpose.msra.mxu0 0
        %517 = vmatpush.bf16.xpose.msra.mxu0 %v508
        %518 = vmatmul.bf16.gmra.mxu0 %v505
        %v519 = vpop.f32.mrf.mxu0
        %v520 = vadd.f32 0.0, %v519
        %v521 = vpop.f32.mrf.mxu0
        %522 = vdwg.mxu0
        %v523 = vsel %vm290, %v520, -inf
        %524 = vmax.xlane.f32.xlu0 %v523
        %v525 = vpop.xlane.xlu0 %524
        %v526 = vsub.f32 %v520, %v525
        %v527 = vmul.f32 %v526, 1.442695
        %v528 = vpow.pop %v527
        %v529 = vsel %vm290, %v528, 0.0
        %530 = vadd.xlane.f32.xlu0 %v529
        %v531 = vpop.xlane.xlu0 %530
        %v532 = vpack.c.bf16 %v528, %v528
        %533 = vrot.lane.b32.xlu0 %v500, 112
        %v534 = vpop.permute.xlu0 %533
        %v536 = vsel %vm290, %v532, 0
        %v539 = vsel %vm294, %v534, 0
        %541 = vmatpush.bf16.msra.mxu0 0
        %542 = vmatpush.bf16.msra.mxu0 0
        %543 = vmatpush.bf16.msra.mxu0 0
        %544 = vmatpush.bf16.msra.mxu0 0
        %545 = vmatpush.bf16.msra.mxu0 0
        %546 = vmatpush.bf16.msra.mxu0 0
        %547 = vmatpush.bf16.msra.mxu0 0
        %548 = vmatpush.bf16.msra.mxu0 %v539
        %549 = vmatmul.bf16.gmra.mxu0 %v536
        %v550 = vpop.f32.mrf.mxu0
        %v551 = vadd.f32 0.0, %v550
        %v552 = vpop.f32.mrf.mxu0
        %553 = vdwg.mxu0
        %v554 = vrcp.pop %v531
        %v555 = vmul.f32 %v551, %v554
        %v556 = vpack.c.bf16 %v555, %v555
        %v558 = vsel %vm290, %v556, 0
        %v561 = vsel %vm294, %v284, 0
        %563 = vmatpush.bf16.msra.mxu0 0
        %564 = vmatpush.bf16.msra.mxu0 0
        %565 = vmatpush.bf16.msra.mxu0 0
        %566 = vmatpush.bf16.msra.mxu0 0
        %567 = vmatpush.bf16.msra.mxu0 0
        %568 = vmatpush.bf16.msra.mxu0 0
        %569 = vmatpush.bf16.msra.mxu0 0
        %570 = vmatpush.bf16.msra.mxu0 %v561
        %571 = vmatmul.bf16.gmra.mxu0 %v558
        %v572 = vpop.f32.mrf.mxu0
        %v573 = vadd.f32 0.0, %v572
        %v574 = vpop.f32.mrf.mxu0
        %575 = vdwg.mxu0
        %v576 = vadd.f32 %v479, %v573
        %577 = vrot.lane.b32.xlu0 %v286, 104
        %v578 = vpop.permute.xlu0 %577
        %v580 = vsel %vm290, %v578, 0
        %582 = vmatpush.bf16.msra.mxu0 0
        %583 = vmatpush.bf16.msra.mxu0 0
        %584 = vmatpush.bf16.msra.mxu0 0
        %585 = vmatpush.bf16.msra.mxu0 0
        %586 = vmatpush.bf16.msra.mxu0 0
        %587 = vmatpush.bf16.msra.mxu0 0
        %588 = vmatpush.bf16.msra.mxu0 0
        %589 = vmatpush.bf16.msra.mxu0 %v296
        %590 = vmatmul.bf16.gmra.mxu0 %v580
        %v591 = vpop.f32.mrf.mxu0
        %v592 = vadd.f32 %v288, %v591
        %v593 = vpop.f32.mrf.mxu0
        %594 = vdwg.mxu0
        %v595 = vpack.c.bf16 %v592, %v592
        %597 = vrot.lane.b32.xlu0 %v595, 120
        %v598 = vpop.permute.xlu0 %597
        %v600 = vsel %vm290, %v595, 0
        %v603 = vsel %vm290, %v598, 0
        %605 = vmatpush.bf16.xpose.msra.mxu0 0
        %606 = vmatpush.bf16.xpose.msra.mxu0 0
        %607 = vmatpush.bf16.xpose.msra.mxu0 0
        %608 = vmatpush.bf16.xpose.msra.mxu0 0
        %609 = vmatpush.bf16.xpose.msra.mxu0 0
        %610 = vmatpush.bf16.xpose.msra.mxu0 0
        %611 = vmatpush.bf16.xpose.msra.mxu0 0
        %612 = vmatpush.bf16.xpose.msra.mxu0 %v603
        %613 = vmatmul.bf16.gmra.mxu0 %v600
        %v614 = vpop.f32.mrf.mxu0
        %v615 = vadd.f32 0.0, %v614
        %v616 = vpop.f32.mrf.mxu0
        %617 = vdwg.mxu0
        %v618 = vsel %vm290, %v615, -inf
        %619 = vmax.xlane.f32.xlu0 %v618
        %v620 = vpop.xlane.xlu0 %619
        %v621 = vsub.f32 %v615, %v620
        %v622 = vmul.f32 %v621, 1.442695
        %v623 = vpow.pop %v622
        %v624 = vsel %vm290, %v623, 0.0
        %625 = vadd.xlane.f32.xlu0 %v624
        %v626 = vpop.xlane.xlu0 %625
        %v627 = vpack.c.bf16 %v623, %v623
        %628 = vrot.lane.b32.xlu0 %v595, 112
        %v629 = vpop.permute.xlu0 %628
        %v631 = vsel %vm290, %v627, 0
        %v634 = vsel %vm294, %v629, 0
        %636 = vmatpush.bf16.msra.mxu0 0
        %637 = vmatpush.bf16.msra.mxu0 0
        %638 = vmatpush.bf16.msra.mxu0 0
        %639 = vmatpush.bf16.msra.mxu0 0
        %640 = vmatpush.bf16.msra.mxu0 0
        %641 = vmatpush.bf16.msra.mxu0 0
        %642 = vmatpush.bf16.msra.mxu0 0
        %643 = vmatpush.bf16.msra.mxu0 %v634
        %644 = vmatmul.bf16.gmra.mxu0 %v631
        %v645 = vpop.f32.mrf.mxu0
        %v646 = vadd.f32 0.0, %v645
        %v647 = vpop.f32.mrf.mxu0
        %648 = vdwg.mxu0
        %v649 = vrcp.pop %v626
        %v650 = vmul.f32 %v646, %v649
        %v651 = vpack.c.bf16 %v650, %v650
        %v653 = vsel %vm290, %v651, 0
        %v656 = vsel %vm294, %v285, 0
        %658 = vmatpush.bf16.msra.mxu0 0
        %659 = vmatpush.bf16.msra.mxu0 0
        %660 = vmatpush.bf16.msra.mxu0 0
        %661 = vmatpush.bf16.msra.mxu0 0
        %662 = vmatpush.bf16.msra.mxu0 0
        %663 = vmatpush.bf16.msra.mxu0 0
        %664 = vmatpush.bf16.msra.mxu0 0
        %665 = vmatpush.bf16.msra.mxu0 %v656
        %666 = vmatmul.bf16.gmra.mxu0 %v653
        %v667 = vpop.f32.mrf.mxu0
        %v668 = vadd.f32 0.0, %v667
        %v669 = vpop.f32.mrf.mxu0
        %670 = vdwg.mxu0
        %v671 = vadd.f32 %v576, %v668
        %v672 = vld [vmem:[%s4] sm:$0x1]
        %v674 = vperm.slane %v672, 0
        %v676 = vadd.f32 %v671, %v674
        %vm677 = vcmask 261120
        %678 = vst.msk [vmem:[%s272] sm:$0xff] %vm677, %v676
        %s679 = sand.u32 %s141, 1
        %s680 = scalar_lea.sflag [#allocation4], %s679
        %s681 = sand.u32 %s141, 1
        %s682 = smul.addr %s681, 8
        %s683 = scalar_lea.vmem [#allocation8], %s682
        // Predicated region
        $region53: #{tpu_custom_call.1} parent=39 // pred_check
          %p684 = pneg %p151
        $region54: #{tpu_custom_call.1} parent=39 // pred_check_branch
          %686 = sbr.rel (%p684) target = $region56
        $region55: #{tpu_custom_call.1} parent=39 // pred_region
          %688 = vsyncadd %s680, 0
          %s689 = smul.addr %s23, 8
          %s690 = scalar_lea.hbm %s5, %s689
          %s692 = sshll.u32 %s683, 4
          %s693 = int_to_ptr.vmem [resolvable:$true] %s692
          %s694 = sshll.u32 %s690, 4
          %s695 = int_to_ptr.hbm [resolvable:$true] %s694
          %697 = dma.vmem_to_hbm [thread:$0]  %s693, 128, %s695, %s680
        $region56: #{tpu_custom_call.1} parent=39 // pred_fallthru
          _
      $region40: #{tpu_custom_call.1} parent=5 // pred_fallthru
        _
      %p698 = scmp.le.s32.totalorder 2, %s18
      // Predicated region
      $region57: #{tpu_custom_call.1} parent=5 // pred_check
        %p699 = pneg %p698
      $region58: #{tpu_custom_call.1} parent=5 // pred_check_branch
        %701 = sbr.rel (%p699) target = $region60
      $region59: #{tpu_custom_call.1} parent=5 // pred_region
        %s702 = ssub.s32 %s18, 2
        // Predicated region
        $region61: #{tpu_custom_call.1} parent=59 // pred_check
          %p703 = pneg %p157
        $region62: #{tpu_custom_call.1} parent=59 // pred_check_branch
          %705 = sbr.rel (%p703) target = $region64
        $region63: #{tpu_custom_call.1} parent=59 // pred_region
          %s706 = sand.u32 %s142, 1
          %s707 = scalar_lea.sflag [#allocation4], %s706
          %s708 = sand.u32 %s142, 1
          %s709 = smul.addr %s708, 8
          %s710 = scalar_lea.vmem [#allocation8], %s709
          %712 = dma.done %s707, 128
        $region64: #{tpu_custom_call.1} parent=59 // pred_fallthru
          _
      $region60: #{tpu_custom_call.1} parent=5 // pred_fallthru
        _
    $region6: #{tpu_custom_call.1} parent=1 // loop_footer
      %s22 = sadd.s32 1, %s18
    $region7: #{tpu_custom_call.1} parent=1 // loop_footer_branch
      %17 = sbr.rel target = $region3
    $region8: #{tpu_custom_call.1} parent=1 // loop_exit
      _
    %713 = vsyncpa [#allocation3], 1
    %s714 = scalar_lea.sflag [#allocation3], 1
    %715 = vsyncpa %s714, 1
    %716 = vsyncpa [#allocation6], 1
    %717 = vsyncpa [#allocation4], 1
    %s718 = scalar_lea.sflag [#allocation4], 1
    %719 = vsyncpa %s718, 1

</llo_original>
